<compile_context>
chip_gen: v7x
topology: tpu7x:2x2x1
jax: 0.10.0
libtpu: 0.0.40
codegen_flags: <defaults>
</compile_context>

<pallas_src>
import functools

import jax
import jax.numpy as jnp
from jax.experimental import pallas as pl
from jax.experimental.pallas import tpu as pltpu


def _round_up(x: int, m: int) -> int:
    return ((x + m - 1) // m) * m


def _model_concat_kernel(x_ref, w1_ref, b1_ref, w2_ref, b2_ref, o_ref, acc_ref):
    """Fused backbone + multi-head logits + concat, K-tiled over D.

    Grid = (batch_tiles, k_tiles); k (reduction over D) is the last axis.

    x_ref:  [TB, TK]      flattened-input tile
    w1_ref: [TK, HIDp]    backbone weight K-tile
    b1_ref: [1, HIDp]     backbone bias (applied once, at finalize)
    w2_ref: [HIDp, Tp]    column-concatenated head weights (lane-padded)
    b2_ref: [1, Tp]       concatenated head biases (lane-padded)
    o_ref:  [TB, Tp]      concatenated action logits tile
    acc_ref:[TB, HIDp]    f32 accumulator for the backbone matmul
    """
    k = pl.program_id(1)

    @pl.when(k == 0)
    def _init():
        acc_ref[...] = jnp.zeros_like(acc_ref)

    # Backbone partial matmul on the MXU, f32 accumulation.
    acc_ref[...] += jnp.dot(
        x_ref[...], w1_ref[...], preferred_element_type=jnp.float32
    )

    @pl.when(k == pl.num_programs(1) - 1)
    def _finalize():
        # Bias + ReLU applied exactly once (not per K step).
        h = jnp.maximum(acc_ref[...] + b1_ref[...], 0.0)
        # All heads at once; writing into o_ref realizes the concat(dim=-1).
        logits = (
            jnp.dot(
                h.astype(w2_ref.dtype),
                w2_ref[...],
                preferred_element_type=jnp.float32,
            )
            + b2_ref[...]
        )
        o_ref[...] = logits.astype(o_ref.dtype)


@functools.partial(jax.jit, static_argnames=("compute_dtype",))
def _forward_impl(x_flat, w1, b1, w2, b2, compute_dtype):
    B, D = x_flat.shape
    HID = w1.shape[1]
    T = w2.shape[1]

    # --- padding for lane-dense layouts and clean tiling -------------------
    TB = min(128, _round_up(B, 8))            # batch tile (>=8 sublanes)
    TK = min(1024, _round_up(D, 128))         # reduction tile over D
    B_pad = _round_up(B, TB)
    D_pad = _round_up(D, TK)
    HID_pad = _round_up(HID, 128)
    T_pad = _round_up(T, 128)                 # lane-dense output (unmasked vst)

    cd = compute_dtype
    x_p = jnp.pad(x_flat, ((0, B_pad - B), (0, D_pad - D))).astype(cd)
    w1_p = jnp.pad(w1, ((0, D_pad - D), (0, HID_pad - HID))).astype(cd)
    w2_p = jnp.pad(w2, ((0, HID_pad - HID), (0, T_pad - T))).astype(cd)
    b1_p = jnp.pad(b1, (0, HID_pad - HID)).reshape(1, HID_pad).astype(jnp.float32)
    b2_p = jnp.pad(b2, (0, T_pad - T)).reshape(1, T_pad).astype(jnp.float32)

    n_b = B_pad // TB
    n_k = D_pad // TK
    bytes_per = jnp.dtype(cd).itemsize

    # Right-sized VMEM request: double-buffered streamed tiles + residents,
    # with 2x headroom (capped well below physical VMEM on every generation).
    tile_bytes = (
        2 * TB * TK * bytes_per          # x tile, double-buffered
        + 2 * TK * HID_pad * bytes_per   # w1 K-tile, double-buffered
        + HID_pad * T_pad * bytes_per    # w2 (resident)
        + 2 * TB * T_pad * 4             # out tile, double-buffered
        + TB * HID_pad * 4               # accumulator scratch
        + (HID_pad + T_pad) * 4          # biases
    )
    vmem_limit = min(max(2 * tile_bytes, 4 << 20), 32 << 20)

    out = pl.pallas_call(
        _model_concat_kernel,
        out_shape=jax.ShapeDtypeStruct((B_pad, T_pad), jnp.float32),
        grid_spec=pltpu.PrefetchScalarGridSpec(
            num_scalar_prefetch=0,
            grid=(n_b, n_k),
            in_specs=[
                pl.BlockSpec((TB, TK), lambda i, k: (i, k)),
                pl.BlockSpec((TK, HID_pad), lambda i, k: (k, 0)),
                pl.BlockSpec((1, HID_pad), lambda i, k: (0, 0)),
                pl.BlockSpec((HID_pad, T_pad), lambda i, k: (0, 0)),
                pl.BlockSpec((1, T_pad), lambda i, k: (0, 0)),
            ],
            out_specs=pl.BlockSpec((TB, T_pad), lambda i, k: (i, 0)),
            scratch_shapes=[pltpu.VMEM((TB, HID_pad), jnp.float32)],
        ),
        compiler_params=pltpu.CompilerParams(
            dimension_semantics=("parallel", "arbitrary"),
            vmem_limit_bytes=vmem_limit,
        ),
    )(x_p, w1_p, b1_p, w2_p, b2_p)

    # Slice padding back off: rows -> real batch, cols -> sum(n_i).
    return out[:B, :T]


def grad_cam_model_wrapper_forward(
    x_nchw, w1, b1, head_weights, head_biases, *, compute_dtype=jnp.float32
):
    """Equivalent of GradCamModelWrapper.forward(x).

    x_nchw:       [B, C, H, W] float32
    w1:           [C*H*W, HID]
    b1:           [HID]
    head_weights: list of [HID, n_i]
    head_biases:  list of [n_i]
    compute_dtype: jnp.float32 (default) or jnp.bfloat16 (bandwidth-bound path
                   on v6e/v7x; accumulation stays f32 either way).
    returns:      [B, sum(n_i)]  (concatenated action logits)
    """
    B = x_nchw.shape[0]
    D = int(x_nchw.shape[1] * x_nchw.shape[2] * x_nchw.shape[3])
    x_flat = x_nchw.reshape(B, D).astype(jnp.float32)

    # Column-wise concatenation of the head parameters == torch.concatenate of
    # the per-head logits along dim=-1.
    w2 = jnp.concatenate(head_weights, axis=-1)
    b2 = jnp.concatenate(head_biases, axis=-1)

    return _forward_impl(x_flat, w1, b1, w2, b2, compute_dtype)


def _reference_forward(x_nchw, w1, b1, head_weights, head_biases):
    """Plain-JAX reference mirroring the PyTorch semantics: model(x) returns a
    list of head logits which are concatenated along dim=-1."""
    B = x_nchw.shape[0]
    x_flat = x_nchw.reshape(B, -1).astype(jnp.float32)
    feats = jnp.maximum(x_flat @ w1 + b1, 0.0)
    action_logits = [feats @ wh + bh for wh, bh in zip(head_weights, head_biases)]
    return jnp.concatenate(action_logits, axis=-1)


if __name__ == "__main__":
    key = jax.random.PRNGKey(0)
    B, C, H, W = 2, 4, 16, 16
    D = C * H * W
    HID = 128
    head_sizes = (8, 8, 16)  # three action heads -> concatenated logits of size 32

    keys = jax.random.split(key, 2 + 2 * len(head_sizes) + 1)
    x = jax.random.normal(keys[0], (B, C, H, W), dtype=jnp.float32)
    w1 = jax.random.normal(keys[1], (D, HID), dtype=jnp.float32) * 0.02
    b1 = jax.random.normal(keys[2], (HID,), dtype=jnp.float32) * 0.01
    head_weights = []
    head_biases = []
    for i, n in enumerate(head_sizes):
        head_weights.append(
            jax.random.normal(keys[3 + 2 * i], (HID, n), dtype=jnp.float32) * 0.05
        )
        head_biases.append(
            jax.random.normal(keys[4 + 2 * i], (n,), dtype=jnp.float32) * 0.01
        )

    out = grad_cam_model_wrapper_forward(x, w1, b1, head_weights, head_biases)
    out = jax.block_until_ready(out)

    ref = _reference_forward(x, w1, b1, head_weights, head_biases)
    assert out.shape == (B, sum(head_sizes)), out.shape
    assert jnp.allclose(out, ref, atol=1e-4, rtol=1e-4), float(
        jnp.max(jnp.abs(out - ref))
    )
    print("KERNEL_OK")
</pallas_src>

<mosaic_0001>
module attributes {stable_mosaic.version = 11 : i64} {
  func.func @_model_concat_kernel(%arg0: i32, %arg1: i32, %arg2: memref<8x1024xf32, #tpu.memory_space<vmem>>, %arg3: memref<1024x128xf32, #tpu.memory_space<vmem>>, %arg4: memref<1x128xf32, #tpu.memory_space<vmem>>, %arg5: memref<128x128xf32, #tpu.memory_space<vmem>>, %arg6: memref<1x128xf32, #tpu.memory_space<vmem>>, %arg7: memref<8x128xf32, #tpu.memory_space<vmem>>, %arg8: memref<8x128xf32, #tpu.memory_space<vmem>>) attributes {dimension_semantics = [#tpu.dimension_semantics<parallel>, #tpu.dimension_semantics<arbitrary>], iteration_bounds = array<i64: 1, 1>, scalar_prefetch = 0 : i64, scratch_operands = 1 : i64, tpu.core_type = #tpu.core_type<tc>, window_params = [{transform_indices = @transform_0, window_bounds = array<i64: 8, 1024>}, {transform_indices = @transform_1, window_bounds = array<i64: 1024, 128>}, {pipeline_mode = #tpu.pipeline_mode<synchronous>, transform_indices = @transform_2, window_bounds = array<i64: 1, 128>}, {pipeline_mode = #tpu.pipeline_mode<synchronous>, transform_indices = @transform_3, window_bounds = array<i64: 128, 128>}, {pipeline_mode = #tpu.pipeline_mode<synchronous>, transform_indices = @transform_4, window_bounds = array<i64: 1, 128>}, {transform_indices = @transform_5, window_bounds = array<i64: 8, 128>}]} {
    %c0_i32 = arith.constant 0 : i32
    %0 = arith.cmpi eq, %arg1, %c0_i32 : i32
    %1 = arith.extui %0 : i1 to i32
    %c0_i32_0 = arith.constant 0 : i32
    %2 = arith.cmpi ne, %1, %c0_i32_0 : i32
    scf.if %2 {
      %cst_10 = arith.constant 0.000000e+00 : f32
      %12 = vector.broadcast %cst_10 : f32 to vector<8x128xf32>
      %c0_11 = arith.constant 0 : index
      %c0_12 = arith.constant 0 : index
      %13 = vector.load %arg8[%c0_11, %c0_12] : memref<8x128xf32, #tpu.memory_space<vmem>>, vector<8x128xf32>
      tpu.vector_store %arg8[%c0_11, %c0_12], %12 {strides = array<i32>} : memref<8x128xf32, #tpu.memory_space<vmem>>, vector<8x128xf32>,
    } else {
    }
    %c0 = arith.constant 0 : index
    %c0_1 = arith.constant 0 : index
    %3 = vector.load %arg8[%c0, %c0_1] : memref<8x128xf32, #tpu.memory_space<vmem>>, vector<8x128xf32>
    %c0_2 = arith.constant 0 : index
    %c0_3 = arith.constant 0 : index
    %4 = vector.load %arg2[%c0_2, %c0_3] : memref<8x1024xf32, #tpu.memory_space<vmem>>, vector<8x1024xf32>
    %c0_4 = arith.constant 0 : index
    %c0_5 = arith.constant 0 : index
    %5 = vector.load %arg3[%c0_4, %c0_5] : memref<1024x128xf32, #tpu.memory_space<vmem>>, vector<1024x128xf32>
    %cst = arith.constant dense<0.000000e+00> : vector<8x128xf32>
    %6 = tpu.matmul %4, %5, %cst {dimension_numbers = #tpu.dot_dimension_numbers<[1], [0], [0], [1], [0, 0, 1, 1], [], []>} : vector<8x1024xf32>, vector<1024x128xf32>, vector<8x128xf32> -> vector<8x128xf32>
    %7 = arith.addf %3, %6 : vector<8x128xf32>
    %c0_6 = arith.constant 0 : index
    %c0_7 = arith.constant 0 : index
    %8 = vector.load %arg8[%c0_6, %c0_7] : memref<8x128xf32, #tpu.memory_space<vmem>>, vector<8x128xf32>
    tpu.vector_store %arg8[%c0_6, %c0_7], %7 {strides = array<i32>} : memref<8x128xf32, #tpu.memory_space<vmem>>, vector<8x128xf32>,
    %c0_i32_8 = arith.constant 0 : i32
    %9 = arith.cmpi eq, %arg1, %c0_i32_8 : i32
    %10 = arith.extui %9 : i1 to i32
    %c0_i32_9 = arith.constant 0 : i32
    %11 = arith.cmpi ne, %10, %c0_i32_9 : i32
    scf.if %11 {
      %c0_10 = arith.constant 0 : index
      %c0_11 = arith.constant 0 : index
      %12 = vector.load %arg8[%c0_10, %c0_11] : memref<8x128xf32, #tpu.memory_space<vmem>>, vector<8x128xf32>
      %c0_12 = arith.constant 0 : index
      %c0_13 = arith.constant 0 : index
      %13 = vector.load %arg4[%c0_12, %c0_13] : memref<1x128xf32, #tpu.memory_space<vmem>>, vector<1x128xf32>
      %14 = vector.broadcast %13 : vector<1x128xf32> to vector<8x128xf32>
      %15 = arith.addf %12, %14 : vector<8x128xf32>
      %cst_14 = arith.constant 0.000000e+00 : f32
      %16 = vector.broadcast %cst_14 : f32 to vector<8x128xf32>
      %17 = arith.maximumf %15, %16 : vector<8x128xf32>
      %c0_15 = arith.constant 0 : index
      %c0_16 = arith.constant 0 : index
      %18 = vector.load %arg5[%c0_15, %c0_16] : memref<128x128xf32, #tpu.memory_space<vmem>>, vector<128x128xf32>
      %cst_17 = arith.constant dense<0.000000e+00> : vector<8x128xf32>
      %19 = tpu.matmul %17, %18, %cst_17 {dimension_numbers = #tpu.dot_dimension_numbers<[1], [0], [0], [1], [0, 0, 1, 1], [], []>} : vector<8x128xf32>, vector<128x128xf32>, vector<8x128xf32> -> vector<8x128xf32>
      %c0_18 = arith.constant 0 : index
      %c0_19 = arith.constant 0 : index
      %20 = vector.load %arg6[%c0_18, %c0_19] : memref<1x128xf32, #tpu.memory_space<vmem>>, vector<1x128xf32>
      %21 = vector.broadcast %20 : vector<1x128xf32> to vector<8x128xf32>
      %22 = arith.addf %19, %21 : vector<8x128xf32>
      %c0_20 = arith.constant 0 : index
      %c0_21 = arith.constant 0 : index
      %23 = vector.load %arg7[%c0_20, %c0_21] : memref<8x128xf32, #tpu.memory_space<vmem>>, vector<8x128xf32>
      tpu.vector_store %arg7[%c0_20, %c0_21], %22 {strides = array<i32>} : memref<8x128xf32, #tpu.memory_space<vmem>>, vector<8x128xf32>,
    } else {
    }
    return
  }
  func.func @transform_0(%arg0: i32, %arg1: i32) -> (i32, i32) {
    %c0_i32 = arith.constant 0 : i32
    return %arg0, %arg1 : i32, i32
  }
  func.func @transform_1(%arg0: i32, %arg1: i32) -> (i32, i32) {
    %c0_i32 = arith.constant 0 : i32
    %c0_i32_0 = arith.constant 0 : i32
    return %arg1, %c0_i32 : i32, i32
  }
  func.func @transform_2(%arg0: i32, %arg1: i32) -> (i32, i32) {
    %c0_i32 = arith.constant 0 : i32
    %c0_i32_0 = arith.constant 0 : i32
    %c0_i32_1 = arith.constant 0 : i32
    return %c0_i32, %c0_i32_0 : i32, i32
  }
  func.func @transform_3(%arg0: i32, %arg1: i32) -> (i32, i32) {
    %c0_i32 = arith.constant 0 : i32
    %c0_i32_0 = arith.constant 0 : i32
    %c0_i32_1 = arith.constant 0 : i32
    return %c0_i32, %c0_i32_0 : i32, i32
  }
  func.func @transform_4(%arg0: i32, %arg1: i32) -> (i32, i32) {
    %c0_i32 = arith.constant 0 : i32
    %c0_i32_0 = arith.constant 0 : i32
    %c0_i32_1 = arith.constant 0 : i32
    return %c0_i32, %c0_i32_0 : i32, i32
  }
  func.func @transform_5(%arg0: i32, %arg1: i32) -> (i32, i32) {
    %c0_i32 = arith.constant 0 : i32
    %c0_i32_0 = arith.constant 0 : i32
    return %arg0, %c0_i32 : i32, i32
  }
}

</mosaic_0001>

<llo_original>
// kernel: _forward_impl.1
$region0: #{_forward_impl.1}
  #allocation0 [shape = 'u32[]', space=smem, size = 0x4, offset = 0x4, fixed_abs, tag = 'smem constant byte address 0x4 - core index']
  #allocation1 [shape = 'u32[144,128]{1,0:T(1,128)}', space=vmem, size = 0x12000, scoped, tag = 'internal scratch']
  #allocation2 [shape = 'f32[8,128]{1,0:T(8,128)}', space=vmem, size = 0x1000, scoped, tag = 'scratch operand']
  %s0 = inlined_call_operand.vmem [shape: f32[8,1024], index: 0, kind: input, shape index: {}]
  %s1 = inlined_call_operand.hbm [shape: f32[1024,128], index: 1, kind: input, shape index: {}]
  %s2 = inlined_call_operand.vmem [shape: f32[1,128], index: 2, kind: input, shape index: {}]
  %s3 = inlined_call_operand.vmem [shape: f32[128,128], index: 3, kind: input, shape index: {}]
  %s4 = inlined_call_operand.vmem [shape: f32[1,128], index: 4, kind: input, shape index: {}]
  %s5 = inlined_call_operand.vmem [shape: f32[8,128], index: 5, kind: output, shape index: {}]
  %s6 = sld [smem:[#allocation0]]
  $region42: #{_forward_impl.1} parent=0
    _
  %s8 = ssub.s32 1, %s6
  %s9 = scalar_select 0, %s8, %s6
  $region1: #{_forward_impl.1} parent=0
    #allocation3 [shape = 'u8[524288]{0}', space=vmem, size = 0x80000, scoped, tag = 'input window, operand 1, single buffered']
    #allocation4 [shape = 's32[1]{0}', space=sflag, size = 0x4, scoped, tag = 'scoped memory for _forward_impl.1']
    %10 = vsyncpa [#allocation4], 0
    // Predicated region
    $region2: #{_forward_impl.1} parent=1 // pred_check
      _
    $region3: #{_forward_impl.1} parent=1 // pred_check_branch
      %12 = sbr.rel (0) target = $region5
    $region4: #{_forward_impl.1} parent=1 // pred_region
      _
    $region5: #{_forward_impl.1} parent=1 // pred_fallthru
      _
    // Predicated region
    $region6: #{_forward_impl.1} parent=1 // pred_check
      _
    $region7: #{_forward_impl.1} parent=1 // pred_check_branch
      %14 = sbr.rel (0) target = $region9
    $region8: #{_forward_impl.1} parent=1 // pred_region
      %s16 = ssub.s32 16384, 16384
      %17 = vsyncadd [#allocation4], %s16
      %s18 = sshll.u32 [#allocation3], 4
      %s19 = int_to_ptr.vmem [resolvable:$true] %s18
      %24 = dma.hbm_to_vmem [thread:$0]  %s1, 16384, %s19, [#allocation4], 128, 128, 8
    $region9: #{_forward_impl.1} parent=1 // pred_fallthru
      _
    // Predicated region
    $region10: #{_forward_impl.1} parent=1 // pred_check
      _
    $region11: #{_forward_impl.1} parent=1 // pred_check_branch
      %26 = sbr.rel (0) target = $region13
    $region12: #{_forward_impl.1} parent=1 // pred_region
      _
    $region13: #{_forward_impl.1} parent=1 // pred_fallthru
      _
    // Predicated region
    $region14: #{_forward_impl.1} parent=1 // pred_check
      _
    $region15: #{_forward_impl.1} parent=1 // pred_check_branch
      %28 = sbr.rel (0) target = $region17
    $region16: #{_forward_impl.1} parent=1 // pred_region
      _
    $region17: #{_forward_impl.1} parent=1 // pred_fallthru
      _
    // Predicated region
    $region18: #{_forward_impl.1} parent=1 // pred_check
      _
    $region19: #{_forward_impl.1} parent=1 // pred_check_branch
      %30 = sbr.rel (0) target = $region21
    $region20: #{_forward_impl.1} parent=1 // pred_region
      _
    $region21: #{_forward_impl.1} parent=1 // pred_fallthru
      _
    // Predicated region
    $region22: #{_forward_impl.1} parent=1 // pred_check
      _
    $region23: #{_forward_impl.1} parent=1 // pred_check_branch
      %32 = sbr.rel (0) target = $region25
    $region24: #{_forward_impl.1} parent=1 // pred_region
      %33 = dma.done [#allocation4], 16384
    $region25: #{_forward_impl.1} parent=1 // pred_fallthru
      _
    %p34 = scmp.eq.s32.totalorder 0, 0
    // Predicated region
    $region26: #{_forward_impl.1} parent=1 // pred_check
      %p35 = pneg %p34
    $region27: #{_forward_impl.1} parent=1 // pred_check_branch
      %37 = sbr.rel (%p35) target = $region29
    $region28: #{_forward_impl.1} parent=1 // pred_region
      %38 = vst [vmem:[#allocation2] sm:$0xff] 0.0
    $region29: #{_forward_impl.1} parent=1 // pred_fallthru
      _
    %v39 = vld [vmem:[#allocation2] sm:$0xff]
    %v40 = vld [vmem:[%s0] sm:$0xff]
    %v41 = vld [vmem:[%s0 + $0x8] sm:$0xff]
    %v42 = vld [vmem:[%s0 + $0x10] sm:$0xff]
    %v43 = vld [vmem:[%s0 + $0x18] sm:$0xff]
    %v44 = vld [vmem:[%s0 + $0x20] sm:$0xff]
    %v45 = vld [vmem:[%s0 + $0x28] sm:$0xff]
    %v46 = vld [vmem:[%s0 + $0x30] sm:$0xff]
    %v47 = vld [vmem:[%s0 + $0x38] sm:$0xff]
    %v48 = vld [vmem:[#allocation3] sm:$0xff]
    %v49 = vld [vmem:[#allocation3 + $0x8] sm:$0xff]
    %v50 = vld [vmem:[#allocation3 + $0x10] sm:$0xff]
    %v51 = vld [vmem:[#allocation3 + $0x18] sm:$0xff]
    %v52 = vld [vmem:[#allocation3 + $0x20] sm:$0xff]
    %v53 = vld [vmem:[#allocation3 + $0x28] sm:$0xff]
    %v54 = vld [vmem:[#allocation3 + $0x30] sm:$0xff]
    %v55 = vld [vmem:[#allocation3 + $0x38] sm:$0xff]
    %v56 = vld [vmem:[#allocation3 + $0x40] sm:$0xff]
    %v57 = vld [vmem:[#allocation3 + $0x48] sm:$0xff]
    %v58 = vld [vmem:[#allocation3 + $0x50] sm:$0xff]
    %v59 = vld [vmem:[#allocation3 + $0x58] sm:$0xff]
    %v60 = vld [vmem:[#allocation3 + $0x60] sm:$0xff]
    %v61 = vld [vmem:[#allocation3 + $0x68] sm:$0xff]
    %v62 = vld [vmem:[#allocation3 + $0x70] sm:$0xff]
    %v63 = vld [vmem:[#allocation3 + $0x78] sm:$0xff]
    %v64 = vld [vmem:[#allocation3 + $0x80] sm:$0xff]
    %v65 = vld [vmem:[#allocation3 + $0x88] sm:$0xff]
    %v66 = vld [vmem:[#allocation3 + $0x90] sm:$0xff]
    %v67 = vld [vmem:[#allocation3 + $0x98] sm:$0xff]
    %v68 = vld [vmem:[#allocation3 + $0xa0] sm:$0xff]
    %v69 = vld [vmem:[#allocation3 + $0xa8] sm:$0xff]
    %v70 = vld [vmem:[#allocation3 + $0xb0] sm:$0xff]
    %v71 = vld [vmem:[#allocation3 + $0xb8] sm:$0xff]
    %v72 = vld [vmem:[#allocation3 + $0xc0] sm:$0xff]
    %v73 = vld [vmem:[#allocation3 + $0xc8] sm:$0xff]
    %v74 = vld [vmem:[#allocation3 + $0xd0] sm:$0xff]
    %v75 = vld [vmem:[#allocation3 + $0xd8] sm:$0xff]
    %v76 = vld [vmem:[#allocation3 + $0xe0] sm:$0xff]
    %v77 = vld [vmem:[#allocation3 + $0xe8] sm:$0xff]
    %v78 = vld [vmem:[#allocation3 + $0xf0] sm:$0xff]
    %v79 = vld [vmem:[#allocation3 + $0xf8] sm:$0xff]
    %v80 = vld [vmem:[#allocation3 + $0x100] sm:$0xff]
    %v81 = vld [vmem:[#allocation3 + $0x108] sm:$0xff]
    %v82 = vld [vmem:[#allocation3 + $0x110] sm:$0xff]
    %v83 = vld [vmem:[#allocation3 + $0x118] sm:$0xff]
    %v84 = vld [vmem:[#allocation3 + $0x120] sm:$0xff]
    %v85 = vld [vmem:[#allocation3 + $0x128] sm:$0xff]
    %v86 = vld [vmem:[#allocation3 + $0x130] sm:$0xff]
    %v87 = vld [vmem:[#allocation3 + $0x138] sm:$0xff]
    %v88 = vld [vmem:[#allocation3 + $0x140] sm:$0xff]
    %v89 = vld [vmem:[#allocation3 + $0x148] sm:$0xff]
    %v90 = vld [vmem:[#allocation3 + $0x150] sm:$0xff]
    %v91 = vld [vmem:[#allocation3 + $0x158] sm:$0xff]
    %v92 = vld [vmem:[#allocation3 + $0x160] sm:$0xff]
    %v93 = vld [vmem:[#allocation3 + $0x168] sm:$0xff]
    %v94 = vld [vmem:[#allocation3 + $0x170] sm:$0xff]
    %v95 = vld [vmem:[#allocation3 + $0x178] sm:$0xff]
    %v96 = vld [vmem:[#allocation3 + $0x180] sm:$0xff]
    %v97 = vld [vmem:[#allocation3 + $0x188] sm:$0xff]
    %v98 = vld [vmem:[#allocation3 + $0x190] sm:$0xff]
    %v99 = vld [vmem:[#allocation3 + $0x198] sm:$0xff]
    %v100 = vld [vmem:[#allocation3 + $0x1a0] sm:$0xff]
    %v101 = vld [vmem:[#allocation3 + $0x1a8] sm:$0xff]
    %v102 = vld [vmem:[#allocation3 + $0x1b0] sm:$0xff]
    %v103 = vld [vmem:[#allocation3 + $0x1b8] sm:$0xff]
    %v104 = vld [vmem:[#allocation3 + $0x1c0] sm:$0xff]
    %v105 = vld [vmem:[#allocation3 + $0x1c8] sm:$0xff]
    %v106 = vld [vmem:[#allocation3 + $0x1d0] sm:$0xff]
    %v107 = vld [vmem:[#allocation3 + $0x1d8] sm:$0xff]
    %v108 = vld [vmem:[#allocation3 + $0x1e0] sm:$0xff]
    %v109 = vld [vmem:[#allocation3 + $0x1e8] sm:$0xff]
    %v110 = vld [vmem:[#allocation3 + $0x1f0] sm:$0xff]
    %v111 = vld [vmem:[#allocation3 + $0x1f8] sm:$0xff]
    %v112 = vld [vmem:[#allocation3 + $0x200] sm:$0xff]
    %v113 = vld [vmem:[#allocation3 + $0x208] sm:$0xff]
    %v114 = vld [vmem:[#allocation3 + $0x210] sm:$0xff]
    %v115 = vld [vmem:[#allocation3 + $0x218] sm:$0xff]
    %v116 = vld [vmem:[#allocation3 + $0x220] sm:$0xff]
    %v117 = vld [vmem:[#allocation3 + $0x228] sm:$0xff]
    %v118 = vld [vmem:[#allocation3 + $0x230] sm:$0xff]
    %v119 = vld [vmem:[#allocation3 + $0x238] sm:$0xff]
    %v120 = vld [vmem:[#allocation3 + $0x240] sm:$0xff]
    %v121 = vld [vmem:[#allocation3 + $0x248] sm:$0xff]
    %v122 = vld [vmem:[#allocation3 + $0x250] sm:$0xff]
    %v123 = vld [vmem:[#allocation3 + $0x258] sm:$0xff]
    %v124 = vld [vmem:[#allocation3 + $0x260] sm:$0xff]
    %v125 = vld [vmem:[#allocation3 + $0x268] sm:$0xff]
    %v126 = vld [vmem:[#allocation3 + $0x270] sm:$0xff]
    %v127 = vld [vmem:[#allocation3 + $0x278] sm:$0xff]
    %v128 = vld [vmem:[#allocation3 + $0x280] sm:$0xff]
    %v129 = vld [vmem:[#allocation3 + $0x288] sm:$0xff]
    %v130 = vld [vmem:[#allocation3 + $0x290] sm:$0xff]
    %v131 = vld [vmem:[#allocation3 + $0x298] sm:$0xff]
    %v132 = vld [vmem:[#allocation3 + $0x2a0] sm:$0xff]
    %v133 = vld [vmem:[#allocation3 + $0x2a8] sm:$0xff]
    %v134 = vld [vmem:[#allocation3 + $0x2b0] sm:$0xff]
    %v135 = vld [vmem:[#allocation3 + $0x2b8] sm:$0xff]
    %v136 = vld [vmem:[#allocation3 + $0x2c0] sm:$0xff]
    %v137 = vld [vmem:[#allocation3 + $0x2c8] sm:$0xff]
    %v138 = vld [vmem:[#allocation3 + $0x2d0] sm:$0xff]
    %v139 = vld [vmem:[#allocation3 + $0x2d8] sm:$0xff]
    %v140 = vld [vmem:[#allocation3 + $0x2e0] sm:$0xff]
    %v141 = vld [vmem:[#allocation3 + $0x2e8] sm:$0xff]
    %v142 = vld [vmem:[#allocation3 + $0x2f0] sm:$0xff]
    %v143 = vld [vmem:[#allocation3 + $0x2f8] sm:$0xff]
    %v144 = vld [vmem:[#allocation3 + $0x300] sm:$0xff]
    %v145 = vld [vmem:[#allocation3 + $0x308] sm:$0xff]
    %v146 = vld [vmem:[#allocation3 + $0x310] sm:$0xff]
    %v147 = vld [vmem:[#allocation3 + $0x318] sm:$0xff]
    %v148 = vld [vmem:[#allocation3 + $0x320] sm:$0xff]
    %v149 = vld [vmem:[#allocation3 + $0x328] sm:$0xff]
    %v150 = vld [vmem:[#allocation3 + $0x330] sm:$0xff]
    %v151 = vld [vmem:[#allocation3 + $0x338] sm:$0xff]
    %v152 = vld [vmem:[#allocation3 + $0x340] sm:$0xff]
    %v153 = vld [vmem:[#allocation3 + $0x348] sm:$0xff]
    %v154 = vld [vmem:[#allocation3 + $0x350] sm:$0xff]
    %v155 = vld [vmem:[#allocation3 + $0x358] sm:$0xff]
    %v156 = vld [vmem:[#allocation3 + $0x360] sm:$0xff]
    %v157 = vld [vmem:[#allocation3 + $0x368] sm:$0xff]
    %v158 = vld [vmem:[#allocation3 + $0x370] sm:$0xff]
    %v159 = vld [vmem:[#allocation3 + $0x378] sm:$0xff]
    %v160 = vld [vmem:[#allocation3 + $0x380] sm:$0xff]
    %v161 = vld [vmem:[#allocation3 + $0x388] sm:$0xff]
    %v162 = vld [vmem:[#allocation3 + $0x390] sm:$0xff]
    %v163 = vld [vmem:[#allocation3 + $0x398] sm:$0xff]
    %v164 = vld [vmem:[#allocation3 + $0x3a0] sm:$0xff]
    %v165 = vld [vmem:[#allocation3 + $0x3a8] sm:$0xff]
    %v166 = vld [vmem:[#allocation3 + $0x3b0] sm:$0xff]
    %v167 = vld [vmem:[#allocation3 + $0x3b8] sm:$0xff]
    %v168 = vld [vmem:[#allocation3 + $0x3c0] sm:$0xff]
    %v169 = vld [vmem:[#allocation3 + $0x3c8] sm:$0xff]
    %v170 = vld [vmem:[#allocation3 + $0x3d0] sm:$0xff]
    %v171 = vld [vmem:[#allocation3 + $0x3d8] sm:$0xff]
    %v172 = vld [vmem:[#allocation3 + $0x3e0] sm:$0xff]
    %v173 = vld [vmem:[#allocation3 + $0x3e8] sm:$0xff]
    %v174 = vld [vmem:[#allocation3 + $0x3f0] sm:$0xff]
    %v175 = vld [vmem:[#allocation3 + $0x3f8] sm:$0xff]
    %176 = vmatprep.subr.mxu0 0.0
    %177 = vmatpush1.msra.mxu0 %v48
    %178 = vmatprep.subr.mxu0 0.0
    %179 = vmatpush1.msra.mxu0 %v49
    %180 = vmatprep.subr.mxu0 0.0
    %181 = vmatpush1.msra.mxu0 %v50
    %182 = vmatprep.subr.mxu0 0.0
    %183 = vmatpush1.msra.mxu0 %v51
    %184 = vmatprep.subr.mxu0 0.0
    %185 = vmatpush1.msra.mxu0 %v52
    %186 = vmatprep.subr.mxu0 0.0
    %187 = vmatpush1.msra.mxu0 %v53
    %188 = vmatprep.subr.mxu0 0.0
    %189 = vmatpush1.msra.mxu0 %v54
    %190 = vmatprep.subr.mxu0 0.0
    %191 = vmatpush1.msra.mxu0 %v55
    %192 = vmatprep.subr.mxu0 0.0
    %193 = vmatpush1.msra.mxu0 %v56
    %194 = vmatprep.subr.mxu0 0.0
    %195 = vmatpush1.msra.mxu0 %v57
    %196 = vmatprep.subr.mxu0 0.0
    %197 = vmatpush1.msra.mxu0 %v58
    %198 = vmatprep.subr.mxu0 0.0
    %199 = vmatpush1.msra.mxu0 %v59
    %200 = vmatprep.subr.mxu0 0.0
    %201 = vmatpush1.msra.mxu0 %v60
    %202 = vmatprep.subr.mxu0 0.0
    %203 = vmatpush1.msra.mxu0 %v61
    %204 = vmatprep.subr.mxu0 0.0
    %205 = vmatpush1.msra.mxu0 %v62
    %206 = vmatprep.subr.mxu0 0.0
    %207 = vmatpush1.msra.mxu0 %v63
    %208 = vmatprep.subr.mxu0 0.0
    %209 = vmatpush1.msra.mxu0 %v64
    %210 = vmatprep.subr.mxu0 0.0
    %211 = vmatpush1.msra.mxu0 %v65
    %212 = vmatprep.subr.mxu0 0.0
    %213 = vmatpush1.msra.mxu0 %v66
    %214 = vmatprep.subr.mxu0 0.0
    %215 = vmatpush1.msra.mxu0 %v67
    %216 = vmatprep.subr.mxu0 0.0
    %217 = vmatpush1.msra.mxu0 %v68
    %218 = vmatprep.subr.mxu0 0.0
    %219 = vmatpush1.msra.mxu0 %v69
    %220 = vmatprep.subr.mxu0 0.0
    %221 = vmatpush1.msra.mxu0 %v70
    %222 = vmatprep.subr.mxu0 0.0
    %223 = vmatpush1.msra.mxu0 %v71
    %224 = vmatprep.subr.mxu0 0.0
    %225 = vmatpush1.msra.mxu0 %v72
    %226 = vmatprep.subr.mxu0 0.0
    %227 = vmatpush1.msra.mxu0 %v73
    %228 = vmatprep.subr.mxu0 0.0
    %229 = vmatpush1.msra.mxu0 %v74
    %230 = vmatprep.subr.mxu0 0.0
    %231 = vmatpush1.msra.mxu0 %v75
    %232 = vmatprep.subr.mxu0 0.0
    %233 = vmatpush1.msra.mxu0 %v76
    %234 = vmatprep.subr.mxu0 0.0
    %235 = vmatpush1.msra.mxu0 %v77
    %236 = vmatprep.subr.mxu0 0.0
    %237 = vmatpush1.msra.mxu0 %v78
    %238 = vmatprep.subr.mxu0 0.0
    %239 = vmatpush1.msra.mxu0 %v79
    %240 = vmatprep.mubr.f32.mxu0 %v41
    %241 = vmatmul.mubr.f32.gmra.mrb[0].mxu0 %v40
    %v242 = vpop.f32.mrb[0].mxu0
    %v243 = vadd.f32 0.0, %v242
    %v244 = vpop.f32.mrb[0].mxu0
    %245 = vdwg.mxu0
    %246 = vmatprep.subr.mxu0 0.0
    %247 = vmatpush1.msra.mxu0 %v80
    %248 = vmatprep.subr.mxu0 0.0
    %249 = vmatpush1.msra.mxu0 %v81
    %250 = vmatprep.subr.mxu0 0.0
    %251 = vmatpush1.msra.mxu0 %v82
    %252 = vmatprep.subr.mxu0 0.0
    %253 = vmatpush1.msra.mxu0 %v83
    %254 = vmatprep.subr.mxu0 0.0
    %255 = vmatpush1.msra.mxu0 %v84
    %256 = vmatprep.subr.mxu0 0.0
    %257 = vmatpush1.msra.mxu0 %v85
    %258 = vmatprep.subr.mxu0 0.0
    %259 = vmatpush1.msra.mxu0 %v86
    %260 = vmatprep.subr.mxu0 0.0
    %261 = vmatpush1.msra.mxu0 %v87
    %262 = vmatprep.subr.mxu0 0.0
    %263 = vmatpush1.msra.mxu0 %v88
    %264 = vmatprep.subr.mxu0 0.0
    %265 = vmatpush1.msra.mxu0 %v89
    %266 = vmatprep.subr.mxu0 0.0
    %267 = vmatpush1.msra.mxu0 %v90
    %268 = vmatprep.subr.mxu0 0.0
    %269 = vmatpush1.msra.mxu0 %v91
    %270 = vmatprep.subr.mxu0 0.0
    %271 = vmatpush1.msra.mxu0 %v92
    %272 = vmatprep.subr.mxu0 0.0
    %273 = vmatpush1.msra.mxu0 %v93
    %274 = vmatprep.subr.mxu0 0.0
    %275 = vmatpush1.msra.mxu0 %v94
    %276 = vmatprep.subr.mxu0 0.0
    %277 = vmatpush1.msra.mxu0 %v95
    %278 = vmatprep.subr.mxu0 0.0
    %279 = vmatpush1.msra.mxu0 %v96
    %280 = vmatprep.subr.mxu0 0.0
    %281 = vmatpush1.msra.mxu0 %v97
    %282 = vmatprep.subr.mxu0 0.0
    %283 = vmatpush1.msra.mxu0 %v98
    %284 = vmatprep.subr.mxu0 0.0
    %285 = vmatpush1.msra.mxu0 %v99
    %286 = vmatprep.subr.mxu0 0.0
    %287 = vmatpush1.msra.mxu0 %v100
    %288 = vmatprep.subr.mxu0 0.0
    %289 = vmatpush1.msra.mxu0 %v101
    %290 = vmatprep.subr.mxu0 0.0
    %291 = vmatpush1.msra.mxu0 %v102
    %292 = vmatprep.subr.mxu0 0.0
    %293 = vmatpush1.msra.mxu0 %v103
    %294 = vmatprep.subr.mxu0 0.0
    %295 = vmatpush1.msra.mxu0 %v104
    %296 = vmatprep.subr.mxu0 0.0
    %297 = vmatpush1.msra.mxu0 %v105
    %298 = vmatprep.subr.mxu0 0.0
    %299 = vmatpush1.msra.mxu0 %v106
    %300 = vmatprep.subr.mxu0 0.0
    %301 = vmatpush1.msra.mxu0 %v107
    %302 = vmatprep.subr.mxu0 0.0
    %303 = vmatpush1.msra.mxu0 %v108
    %304 = vmatprep.subr.mxu0 0.0
    %305 = vmatpush1.msra.mxu0 %v109
    %306 = vmatprep.subr.mxu0 0.0
    %307 = vmatpush1.msra.mxu0 %v110
    %308 = vmatprep.subr.mxu0 0.0
    %309 = vmatpush1.msra.mxu0 %v111
    %310 = vmatprep.mubr.f32.mxu0 %v43
    %311 = vmatmul.mubr.f32.gmra.mrb[0].mxu0 %v42
    %v312 = vpop.f32.mrb[0].mxu0
    %v313 = vadd.f32 %v243, %v312
    %v314 = vpop.f32.mrb[0].mxu0
    %315 = vdwg.mxu0
    %316 = vmatprep.subr.mxu0 0.0
    %317 = vmatpush1.msra.mxu0 %v112
    %318 = vmatprep.subr.mxu0 0.0
    %319 = vmatpush1.msra.mxu0 %v113
    %320 = vmatprep.subr.mxu0 0.0
    %321 = vmatpush1.msra.mxu0 %v114
    %322 = vmatprep.subr.mxu0 0.0
    %323 = vmatpush1.msra.mxu0 %v115
    %324 = vmatprep.subr.mxu0 0.0
    %325 = vmatpush1.msra.mxu0 %v116
    %326 = vmatprep.subr.mxu0 0.0
    %327 = vmatpush1.msra.mxu0 %v117
    %328 = vmatprep.subr.mxu0 0.0
    %329 = vmatpush1.msra.mxu0 %v118
    %330 = vmatprep.subr.mxu0 0.0
    %331 = vmatpush1.msra.mxu0 %v119
    %332 = vmatprep.subr.mxu0 0.0
    %333 = vmatpush1.msra.mxu0 %v120
    %334 = vmatprep.subr.mxu0 0.0
    %335 = vmatpush1.msra.mxu0 %v121
    %336 = vmatprep.subr.mxu0 0.0
    %337 = vmatpush1.msra.mxu0 %v122
    %338 = vmatprep.subr.mxu0 0.0
    %339 = vmatpush1.msra.mxu0 %v123
    %340 = vmatprep.subr.mxu0 0.0
    %341 = vmatpush1.msra.mxu0 %v124
    %342 = vmatprep.subr.mxu0 0.0
    %343 = vmatpush1.msra.mxu0 %v125
    %344 = vmatprep.subr.mxu0 0.0
    %345 = vmatpush1.msra.mxu0 %v126
    %346 = vmatprep.subr.mxu0 0.0
    %347 = vmatpush1.msra.mxu0 %v127
    %348 = vmatprep.subr.mxu0 0.0
    %349 = vmatpush1.msra.mxu0 %v128
    %350 = vmatprep.subr.mxu0 0.0
    %351 = vmatpush1.msra.mxu0 %v129
    %352 = vmatprep.subr.mxu0 0.0
    %353 = vmatpush1.msra.mxu0 %v130
    %354 = vmatprep.subr.mxu0 0.0
    %355 = vmatpush1.msra.mxu0 %v131
    %356 = vmatprep.subr.mxu0 0.0
    %357 = vmatpush1.msra.mxu0 %v132
    %358 = vmatprep.subr.mxu0 0.0
    %359 = vmatpush1.msra.mxu0 %v133
    %360 = vmatprep.subr.mxu0 0.0
    %361 = vmatpush1.msra.mxu0 %v134
    %362 = vmatprep.subr.mxu0 0.0
    %363 = vmatpush1.msra.mxu0 %v135
    %364 = vmatprep.subr.mxu0 0.0
    %365 = vmatpush1.msra.mxu0 %v136
    %366 = vmatprep.subr.mxu0 0.0
    %367 = vmatpush1.msra.mxu0 %v137
    %368 = vmatprep.subr.mxu0 0.0
    %369 = vmatpush1.msra.mxu0 %v138
    %370 = vmatprep.subr.mxu0 0.0
    %371 = vmatpush1.msra.mxu0 %v139
    %372 = vmatprep.subr.mxu0 0.0
    %373 = vmatpush1.msra.mxu0 %v140
    %374 = vmatprep.subr.mxu0 0.0
    %375 = vmatpush1.msra.mxu0 %v141
    %376 = vmatprep.subr.mxu0 0.0
    %377 = vmatpush1.msra.mxu0 %v142
    %378 = vmatprep.subr.mxu0 0.0
    %379 = vmatpush1.msra.mxu0 %v143
    %380 = vmatprep.mubr.f32.mxu0 %v45
    %381 = vmatmul.mubr.f32.gmra.mrb[0].mxu0 %v44
    %v382 = vpop.f32.mrb[0].mxu0
    %v383 = vadd.f32 %v313, %v382
    %v384 = vpop.f32.mrb[0].mxu0
    %385 = vdwg.mxu0
    %386 = vmatprep.subr.mxu0 0.0
    %387 = vmatpush1.msra.mxu0 %v144
    %388 = vmatprep.subr.mxu0 0.0
    %389 = vmatpush1.msra.mxu0 %v145
    %390 = vmatprep.subr.mxu0 0.0
    %391 = vmatpush1.msra.mxu0 %v146
    %392 = vmatprep.subr.mxu0 0.0
    %393 = vmatpush1.msra.mxu0 %v147
    %394 = vmatprep.subr.mxu0 0.0
    %395 = vmatpush1.msra.mxu0 %v148
    %396 = vmatprep.subr.mxu0 0.0
    %397 = vmatpush1.msra.mxu0 %v149
    %398 = vmatprep.subr.mxu0 0.0
    %399 = vmatpush1.msra.mxu0 %v150
    %400 = vmatprep.subr.mxu0 0.0
    %401 = vmatpush1.msra.mxu0 %v151
    %402 = vmatprep.subr.mxu0 0.0
    %403 = vmatpush1.msra.mxu0 %v152
    %404 = vmatprep.subr.mxu0 0.0
    %405 = vmatpush1.msra.mxu0 %v153
    %406 = vmatprep.subr.mxu0 0.0
    %407 = vmatpush1.msra.mxu0 %v154
    %408 = vmatprep.subr.mxu0 0.0
    %409 = vmatpush1.msra.mxu0 %v155
    %410 = vmatprep.subr.mxu0 0.0
    %411 = vmatpush1.msra.mxu0 %v156
    %412 = vmatprep.subr.mxu0 0.0
    %413 = vmatpush1.msra.mxu0 %v157
    %414 = vmatprep.subr.mxu0 0.0
    %415 = vmatpush1.msra.mxu0 %v158
    %416 = vmatprep.subr.mxu0 0.0
    %417 = vmatpush1.msra.mxu0 %v159
    %418 = vmatprep.subr.mxu0 0.0
    %419 = vmatpush1.msra.mxu0 %v160
    %420 = vmatprep.subr.mxu0 0.0
    %421 = vmatpush1.msra.mxu0 %v161
    %422 = vmatprep.subr.mxu0 0.0
    %423 = vmatpush1.msra.mxu0 %v162
    %424 = vmatprep.subr.mxu0 0.0
    %425 = vmatpush1.msra.mxu0 %v163
    %426 = vmatprep.subr.mxu0 0.0
    %427 = vmatpush1.msra.mxu0 %v164
    %428 = vmatprep.subr.mxu0 0.0
    %429 = vmatpush1.msra.mxu0 %v165
    %430 = vmatprep.subr.mxu0 0.0
    %431 = vmatpush1.msra.mxu0 %v166
    %432 = vmatprep.subr.mxu0 0.0
    %433 = vmatpush1.msra.mxu0 %v167
    %434 = vmatprep.subr.mxu0 0.0
    %435 = vmatpush1.msra.mxu0 %v168
    %436 = vmatprep.subr.mxu0 0.0
    %437 = vmatpush1.msra.mxu0 %v169
    %438 = vmatprep.subr.mxu0 0.0
    %439 = vmatpush1.msra.mxu0 %v170
    %440 = vmatprep.subr.mxu0 0.0
    %441 = vmatpush1.msra.mxu0 %v171
    %442 = vmatprep.subr.mxu0 0.0
    %443 = vmatpush1.msra.mxu0 %v172
    %444 = vmatprep.subr.mxu0 0.0
    %445 = vmatpush1.msra.mxu0 %v173
    %446 = vmatprep.subr.mxu0 0.0
    %447 = vmatpush1.msra.mxu0 %v174
    %448 = vmatprep.subr.mxu0 0.0
    %449 = vmatpush1.msra.mxu0 %v175
    %450 = vmatprep.mubr.f32.mxu0 %v47
    %451 = vmatmul.mubr.f32.gmra.mrb[0].mxu0 %v46
    %v452 = vpop.f32.mrb[0].mxu0
    %v453 = vadd.f32 %v383, %v452
    %v454 = vpop.f32.mrb[0].mxu0
    %455 = vdwg.mxu0
    %v456 = vadd.f32 %v39, %v453
    %457 = vst [vmem:[#allocation2] sm:$0xff] %v456
    // Predicated region
    $region30: #{_forward_impl.1} parent=1 // pred_check
      %p458 = pneg %p34
    $region31: #{_forward_impl.1} parent=1 // pred_check_branch
      %460 = sbr.rel (%p458) target = $region33
    $region32: #{_forward_impl.1} parent=1 // pred_region
      %v461 = vld [vmem:[#allocation2] sm:$0xff]
      %v462 = vld [vmem:[%s2] sm:$0x1]
      %v464 = vlaneseq
      %v465 = vshrl.u32 %v464, 7
      %v466 = vsub.s32 0, %v465
      %v467 = vrot.slane %v462, %v466
      %v469 = vadd.f32 %v461, %v467
      %v470 = vmax.f32 %v469, 0.0
      %v471 = vld [vmem:[%s3] sm:$0xff]
      %v472 = vld [vmem:[%s3 + $0x8] sm:$0xff]
      %v473 = vld [vmem:[%s3 + $0x10] sm:$0xff]
      %v474 = vld [vmem:[%s3 + $0x18] sm:$0xff]
      %v475 = vld [vmem:[%s3 + $0x20] sm:$0xff]
      %v476 = vld [vmem:[%s3 + $0x28] sm:$0xff]
      %v477 = vld [vmem:[%s3 + $0x30] sm:$0xff]
      %v478 = vld [vmem:[%s3 + $0x38] sm:$0xff]
      %v479 = vld [vmem:[%s3 + $0x40] sm:$0xff]
      %v480 = vld [vmem:[%s3 + $0x48] sm:$0xff]
      %v481 = vld [vmem:[%s3 + $0x50] sm:$0xff]
      %v482 = vld [vmem:[%s3 + $0x58] sm:$0xff]
      %v483 = vld [vmem:[%s3 + $0x60] sm:$0xff]
      %v484 = vld [vmem:[%s3 + $0x68] sm:$0xff]
      %v485 = vld [vmem:[%s3 + $0x70] sm:$0xff]
      %v486 = vld [vmem:[%s3 + $0x78] sm:$0xff]
      %v487 = vld [vmem:[%s4] sm:$0x1]
      %v489 = vlaneseq
      %v490 = vshrl.u32 %v489, 7
      %v491 = vsub.s32 0, %v490
      %v492 = vrot.slane %v487, %v491
      %494 = vmatprep.subr.mxu0 0.0
      %495 = vmatpush1.msra.mxu0 %v471
      %496 = vmatprep.subr.mxu0 0.0
      %497 = vmatpush1.msra.mxu0 %v472
      %498 = vmatprep.subr.mxu0 0.0
      %499 = vmatpush1.msra.mxu0 %v473
      %500 = vmatprep.subr.mxu0 0.0
      %501 = vmatpush1.msra.mxu0 %v474
      %502 = vmatprep.subr.mxu0 0.0
      %503 = vmatpush1.msra.mxu0 %v475
      %504 = vmatprep.subr.mxu0 0.0
      %505 = vmatpush1.msra.mxu0 %v476
      %506 = vmatprep.subr.mxu0 0.0
      %507 = vmatpush1.msra.mxu0 %v477
      %508 = vmatprep.subr.mxu0 0.0
      %509 = vmatpush1.msra.mxu0 %v478
      %510 = vmatprep.subr.mxu0 0.0
      %511 = vmatpush1.msra.mxu0 %v479
      %512 = vmatprep.subr.mxu0 0.0
      %513 = vmatpush1.msra.mxu0 %v480
      %514 = vmatprep.subr.mxu0 0.0
      %515 = vmatpush1.msra.mxu0 %v481
      %516 = vmatprep.subr.mxu0 0.0
      %517 = vmatpush1.msra.mxu0 %v482
      %518 = vmatprep.subr.mxu0 0.0
      %519 = vmatpush1.msra.mxu0 %v483
      %520 = vmatprep.subr.mxu0 0.0
      %521 = vmatpush1.msra.mxu0 %v484
      %522 = vmatprep.subr.mxu0 0.0
      %523 = vmatpush1.msra.mxu0 %v485
      %524 = vmatprep.subr.mxu0 0.0
      %525 = vmatpush1.msra.mxu0 %v486
      %526 = vmatprep.subr.mxu0 0.0
      %527 = vmatpush1.msra.mxu0 0.0
      %528 = vmatprep.subr.mxu0 0.0
      %529 = vmatpush1.msra.mxu0 0.0
      %530 = vmatprep.subr.mxu0 0.0
      %531 = vmatpush1.msra.mxu0 0.0
      %532 = vmatprep.subr.mxu0 0.0
      %533 = vmatpush1.msra.mxu0 0.0
      %534 = vmatprep.subr.mxu0 0.0
      %535 = vmatpush1.msra.mxu0 0.0
      %536 = vmatprep.subr.mxu0 0.0
      %537 = vmatpush1.msra.mxu0 0.0
      %538 = vmatprep.subr.mxu0 0.0
      %539 = vmatpush1.msra.mxu0 0.0
      %540 = vmatprep.subr.mxu0 0.0
      %541 = vmatpush1.msra.mxu0 0.0
      %542 = vmatprep.subr.mxu0 0.0
      %543 = vmatpush1.msra.mxu0 0.0
      %544 = vmatprep.subr.mxu0 0.0
      %545 = vmatpush1.msra.mxu0 0.0
      %546 = vmatprep.subr.mxu0 0.0
      %547 = vmatpush1.msra.mxu0 0.0
      %548 = vmatprep.subr.mxu0 0.0
      %549 = vmatpush1.msra.mxu0 0.0
      %550 = vmatprep.subr.mxu0 0.0
      %551 = vmatpush1.msra.mxu0 0.0
      %552 = vmatprep.subr.mxu0 0.0
      %553 = vmatpush1.msra.mxu0 0.0
      %554 = vmatprep.subr.mxu0 0.0
      %555 = vmatpush1.msra.mxu0 0.0
      %556 = vmatprep.subr.mxu0 0.0
      %557 = vmatpush1.msra.mxu0 0.0
      %558 = vmatprep.mubr.f32.mxu0 0.0
      %559 = vmatmul.mubr.f32.gmra.mrb[0].mxu0 %v470
      %v560 = vpop.f32.mrb[0].mxu0
      %v561 = vadd.f32 %v492, %v560
      %v562 = vpop.f32.mrb[0].mxu0
      %563 = vdwg.mxu0
      %564 = vst [vmem:[%s5] sm:$0xff] %v561
    $region33: #{_forward_impl.1} parent=1 // pred_fallthru
      _
    // Predicated region
    $region34: #{_forward_impl.1} parent=1 // pred_check
      _
    $region35: #{_forward_impl.1} parent=1 // pred_check_branch
      %566 = sbr.rel (0) target = $region37
    $region36: #{_forward_impl.1} parent=1 // pred_region
      _
    $region37: #{_forward_impl.1} parent=1 // pred_fallthru
      _
    // Predicated region
    $region38: #{_forward_impl.1} parent=1 // pred_check
      _
    $region39: #{_forward_impl.1} parent=1 // pred_check_branch
      %568 = sbr.rel (0) target = $region41
    $region40: #{_forward_impl.1} parent=1 // pred_region
      _
    $region41: #{_forward_impl.1} parent=1 // pred_fallthru
      _
    %569 = vsyncpa [#allocation4], 1

</llo_original>
